<compile_context>
chip_gen: v7x
topology: tpu7x:2x2x1
jax: 0.10.0
libtpu: 0.0.40
codegen_flags: <defaults>
</compile_context>

<pallas_src>
import math
from functools import partial

import numpy as np
import jax
import jax.numpy as jnp
from jax import lax
from jax.experimental import pallas as pl
from jax.experimental.pallas import tpu as pltpu

F32 = jnp.float32
BF16 = jnp.bfloat16
POI_TILE = 512                  # POI-axis tile for geo-conv / prediction matmuls


def _vmem_limit_bytes():
    # Generation-aware scoped-VMEM budget: v5e/v6e have 128 MiB physical, v7x only 64 MiB.
    try:
        cap = pltpu.get_tpu_info().vmem_capacity_bytes
        return min(48 * 1024 * 1024, int(cap * 0.5))
    except Exception:
        return 32 * 1024 * 1024


VMEM_LIMIT = _vmem_limit_bytes()


def round_up(x, m):
    return ((x + m - 1) // m) * m


# ----------------------------------------------------------------------------
# In-kernel helpers
# ----------------------------------------------------------------------------

def _ln(x, g, b, eps):
    mu = jnp.mean(x, axis=-1, keepdims=True)
    var = jnp.mean((x - mu) ** 2, axis=-1, keepdims=True)
    return (x - mu) * lax.rsqrt(var + eps) * g + b


# ----------------------------------------------------------------------------
# Pallas kernels
# ----------------------------------------------------------------------------

def _lin_kernel(x_ref, w_ref, b_ref, o_ref):
    """Per-layer GeoConv Linear, computed once per layer (bf16 output for streaming)."""
    y = jnp.dot(x_ref[...], w_ref[...], preferred_element_type=jnp.float32) + b_ref[...]
    o_ref[...] = y.astype(o_ref.dtype)


def _geoconv_kernel(scale, tile_k, w_ref, xlin_ref, accin_ref, layer_ref, accout_ref, acc_sc):
    """One GeoConv layer: leaky_relu(W_geo @ x_lin) with fused running-mean residual.
    Grid = (M tiles, K tiles); K is the reduction axis (last, arbitrary).
    w_ref: bf16 [tile, tile] streamed; xlin_ref: bf16 [Np, D] fully resident."""
    k = pl.program_id(1)

    @pl.when(k == 0)
    def _():
        acc_sc[...] = jnp.zeros_like(acc_sc)

    k_start = pl.multiple_of(k * tile_k, tile_k)
    x_k = xlin_ref[pl.ds(k_start, tile_k), :]               # slice resident operand
    acc_sc[...] += jnp.dot(w_ref[...], x_k, preferred_element_type=jnp.float32)

    @pl.when(k == pl.num_programs(1) - 1)
    def _():
        y = acc_sc[...]
        y = jnp.where(y > 0, y, 0.01 * y)                   # LeakyReLU
        layer_ref[...] = y
        accout_ref[...] = (accin_ref[...] + y) * scale      # running layer-mean accumulator


def _seqconv_logit_kernel(ep, xj_ref, xi_ref, elt_ref, asrc_ref, adst_ref, o_ref):
    """Node-tile-invariant part of SeqConv, computed exactly once: edge logits row [1,2E]."""
    feat = xj_ref[...] * xi_ref[...] + elt_ref[...]                      # [2E, D]
    dn = (((1,), (1,)), ((), ()))
    l_src = lax.dot_general(asrc_ref[...], feat, dn,
                            preferred_element_type=jnp.float32)          # [1, 2E]
    l_dst = lax.dot_general(adst_ref[...], feat, dn,
                            preferred_element_type=jnp.float32)          # [1, 2E]
    e2 = feat.shape[0]
    first_half = lax.broadcasted_iota(jnp.int32, (1, e2), 1) < ep
    o_ref[...] = jnp.where(first_half, l_src, l_dst)


def _seqconv_agg_kernel(tile_n, logit_ref, dst_ref, xj_ref, o_ref):
    """SeqConv per-destination softmax + scatter-add aggregation, tiled over node rows.
    Edges live on the lane axis; the destination mask is rebuilt in-kernel from iota."""
    e2 = dst_ref.shape[1]
    base = pl.program_id(0) * tile_n
    node_ids = base + lax.broadcasted_iota(jnp.int32, (tile_n, e2), 0)    # [tile_n, 2E]
    m = (node_ids == dst_ref[...]).astype(jnp.float32)
    a = jnp.where(m > 0, logit_ref[...], -1e30)
    a = a - jnp.max(a, axis=-1, keepdims=True)
    ew = jnp.exp(a) * m
    denom = jnp.sum(ew, axis=-1, keepdims=True) + 1e-16                   # PyG softmax eps
    w = ew * pl.reciprocal(denom, approx=True)
    # TODO(synk): for very large edge counts, chunk the 2E lane axis with an in-kernel
    # fori_loop + online softmax to bound the [tile_n, 2E] intermediates (v7x 64 MiB VMEM).
    o_ref[...] = jnp.dot(w, xj_ref[...], preferred_element_type=jnp.float32)   # [tile_n, D]


def _branch_kernel(num_heads, scale, eps, residual, masked_mean,
                   q_ref, kv_ref, km_ref, pm_ref,
                   ln1g_ref, ln1b_ref,
                   wq_ref, bq_ref, wk_ref, bk_ref, wv_ref, bv_ref, wo_ref, bo_ref,
                   ln2g_ref, ln2b_ref, w1_ref, b1_ref, w2_ref, b2_ref,
                   o_ref):
    """Fused transformer branch processing the whole batch in one invocation:
    LN -> MHA (fused QKV, concat heads, single output projection) -> (+qry) -> LN ->
    FFN(+res) -> optional masked mean."""
    B, Lq, D = q_ref.shape
    Lk = kv_ref.shape[1]
    dh = D // num_heads

    q2 = q_ref[...].reshape(B * Lq, D)
    kv2 = kv_ref[...].reshape(B * Lk, D)
    kmask = km_ref[...]                                      # [B, 1, Lk] (1.0 = valid key)

    qry2 = _ln(q2, ln1g_ref[...], ln1b_ref[...], eps)        # [B*Lq, D]

    qp = jnp.dot(qry2, wq_ref[...], preferred_element_type=jnp.float32) + bq_ref[...]
    kp = jnp.dot(kv2, wk_ref[...], preferred_element_type=jnp.float32) + bk_ref[...]
    vp = jnp.dot(kv2, wv_ref[...], preferred_element_type=jnp.float32) + bv_ref[...]
    qp3 = qp.reshape(B, Lq, D)
    kp3 = kp.reshape(B, Lk, D)
    vp3 = vp.reshape(B, Lk, D)

    heads = []
    for h in range(num_heads):                               # static unroll over heads
        lo, hi = h * dh, (h + 1) * dh
        qh, kh, vh = qp3[:, :, lo:hi], kp3[:, :, lo:hi], vp3[:, :, lo:hi]
        sc = jnp.einsum('bqd,bkd->bqk', qh, kh,
                        preferred_element_type=jnp.float32) * scale       # [B, Lq, Lk]
        sc = jnp.where(kmask > 0, sc, -1e30)                 # key_padding_mask
        sc = sc - jnp.max(sc, axis=-1, keepdims=True)
        p = jnp.exp(sc)
        # approx reciprocal (EUP) ~1e-3 rel err vs exact softmax: fine for ranking.
        p = p * pl.reciprocal(jnp.sum(p, axis=-1, keepdims=True), approx=True)
        heads.append(jnp.einsum('bqk,bkd->bqd', p, vh,
                                preferred_element_type=jnp.float32))       # [B, Lq, dh]

    attn_cat = jnp.concatenate(heads, axis=-1).reshape(B * Lq, D)          # [B*Lq, D]
    attn = jnp.dot(attn_cat, wo_ref[...], preferred_element_type=jnp.float32) + bo_ref[...]

    h2 = attn + qry2 if residual else attn
    h2 = _ln(h2, ln2g_ref[...], ln2b_ref[...], eps)
    ff = jnp.maximum(jnp.dot(h2, w1_ref[...], preferred_element_type=jnp.float32)
                     + b1_ref[...], 0.0)
    ff = jnp.dot(ff, w2_ref[...], preferred_element_type=jnp.float32) + b2_ref[...]
    h2 = h2 + ff                                             # PointWiseFeedForward residual
    h3 = h2.reshape(B, Lq, D)

    if masked_mean:
        pmask = pm_ref[...]                                  # [B, Lq, 1]
        cnt = jnp.maximum(jnp.sum(pmask, axis=1, keepdims=True), 1.0)      # [B, 1, 1]
        o_ref[...] = jnp.sum(h3 * pmask, axis=1, keepdims=True) / cnt
    else:
        o_ref[...] = h3                                      # Lq == 1 (geo branch)


def _sde_kernel(betas, dt, y_ref, c_ref, w1a_ref, w1b_ref, b1_ref, w2_ref, b2_ref, o_ref):
    """score MLP (cat folded into split-weight matmuls) + deterministic reverse-SDE drift.
    Note: the reference evaluates score_fn at the FIXED input x (not y_t), so a single
    score evaluation is faithful to the drift of VP_SDE.reverse_sde."""
    y0 = y_ref[...]
    cond = c_ref[...]
    h = jnp.maximum(jnp.dot(y0, w1a_ref[...], preferred_element_type=jnp.float32)
                    + jnp.dot(cond, w1b_ref[...], preferred_element_type=jnp.float32)
                    + b1_ref[...], 0.0)
    score = jnp.dot(h, w2_ref[...], preferred_element_type=jnp.float32) + b2_ref[...]
    # TODO(synk): torchsde Brownian-motion term omitted (non-deterministic sampling);
    # deterministic Stratonovich-midpoint integration of the drift only (ts runs 0 -> t,
    # matching the reference's sdeint(ts=[0, t])).
    # TODO(synk): grid this kernel over the batch axis when B grows (v7x has 2 TCs).
    y = y0
    for (b_n, b_mid) in betas:
        f_n = -0.5 * b_n * y - b_n * score
        y_mid = y + 0.5 * dt * f_n
        f_mid = -0.5 * b_mid * y_mid - b_mid * score
        y = y + dt * f_mid
    o_ref[...] = y


def _pred_kernel(q_ref, k_ref, o_ref):
    """logits tile = [seq|sde] @ [poi|geo].T as ONE K=2D MXU pass (bf16 in, f32 out),
    without materializing the transpose (contraction on the shared 2D axis)."""
    dn = (((1,), (1,)), ((), ()))
    o_ref[...] = lax.dot_general(q_ref[...], k_ref[...], dn,
                                 preferred_element_type=jnp.float32)


# ----------------------------------------------------------------------------
# Kernel wrappers
# ----------------------------------------------------------------------------

def lin_project(x, w, b, tile=POI_TILE):
    """x @ w + b, emitted in bf16 (resident operand for the geo-conv kernel)."""
    Np, D = x.shape
    return pl.pallas_call(
        _lin_kernel,
        out_shape=jax.ShapeDtypeStruct((Np, D), BF16),
        grid=(Np // tile,),
        in_specs=[pl.BlockSpec((tile, D), lambda i: (i, 0)),
                  pl.BlockSpec((D, D), lambda i: (0, 0)),
                  pl.BlockSpec((1, D), lambda i: (0, 0))],
        out_specs=pl.BlockSpec((tile, D), lambda i: (i, 0)),
        compiler_params=pltpu.CompilerParams(
            dimension_semantics=("parallel",), vmem_limit_bytes=VMEM_LIMIT),
    )(x, w, b.reshape(1, D))


def geo_encode(params, poi_pad, w_geo_bf16, num_layer, tile=POI_TILE):
    Np, D = poi_pad.shape
    if num_layer == 0:
        return poi_pad
    layer, acc = poi_pad, poi_pad
    grid = (Np // tile, Np // tile)
    for l in range(num_layer):
        # Per-layer Linear projection computed once (not per M tile), bf16 for streaming.
        x_lin = lin_project(layer, params["geo_lin_w"][l], params["geo_lin_b"][l], tile)
        scale = 1.0 / float(num_layer + 1) if l == num_layer - 1 else 1.0
        layer, acc = pl.pallas_call(
            partial(_geoconv_kernel, scale, tile),
            out_shape=(jax.ShapeDtypeStruct((Np, D), F32),
                       jax.ShapeDtypeStruct((Np, D), F32)),
            grid=grid,
            in_specs=[
                pl.BlockSpec((tile, tile), lambda i, k: (i, k)),   # w_geo tile (bf16)
                pl.BlockSpec((Np, D), lambda i, k: (0, 0)),        # x_lin resident (bf16)
                pl.BlockSpec((tile, D), lambda i, k: (i, 0)),      # acc_in
            ],
            out_specs=(pl.BlockSpec((tile, D), lambda i, k: (i, 0)),
                       pl.BlockSpec((tile, D), lambda i, k: (i, 0))),
            scratch_shapes=[pltpu.VMEM((tile, D), F32)],
            compiler_params=pltpu.CompilerParams(
                dimension_semantics=("parallel", "arbitrary"),
                vmem_limit_bytes=VMEM_LIMIT),
        )(w_geo_bf16, x_lin, acc)
    return acc


def seq_conv(params, poi_embs, seq_graph):
    sess_idx = seq_graph["x"]
    ei = np.asarray(seq_graph["edge_index"])
    n_nodes = int(sess_idx.shape[0])
    E = int(ei.shape[1])
    D = int(poi_embs.shape[1])

    Ep = round_up(max(E, 1), 128)              # lane-pad so the [1, 2E] logits row is dense
    tile_n = 256 if n_nodes > 256 else round_up(n_nodes, 8)
    Nn = round_up(n_nodes, tile_n)

    x = poi_embs[sess_idx]                                          # [N, D] gather (glue)
    elt = (params["distance_emb"][seq_graph["edge_dist"]]
           + params["temporal_emb"][seq_graph["edge_time"]])        # [E, D]
    xs = x[ei[0]]
    xd = x[ei[1]]

    def pad_e(a):
        return jnp.zeros((Ep, D), F32).at[:E].set(a.astype(F32))

    xs_p, xd_p, elt_p = pad_e(xs), pad_e(xd), pad_e(elt)
    xj_all = jnp.concatenate([xs_p, xd_p], axis=0)                  # x at edge source
    xi_all = jnp.concatenate([xd_p, xs_p], axis=0)                  # x at edge target
    elt_all = jnp.concatenate([elt_p, elt_p], axis=0)

    dst_row = np.full((1, 2 * Ep), -1, dtype=np.int32)              # -1 = padded edge
    dst_row[0, :E] = ei[1]
    dst_row[0, Ep:Ep + E] = ei[0]
    dst_row = jnp.asarray(dst_row)

    # Node-tile-invariant edge logits, computed exactly once.
    logits = pl.pallas_call(
        partial(_seqconv_logit_kernel, Ep),
        out_shape=jax.ShapeDtypeStruct((1, 2 * Ep), F32),
    )(xj_all, xi_all, elt_all, params["alpha_src"], params["alpha_dst"])

    full = lambda shape: pl.BlockSpec(shape, lambda i: (0,) * len(shape))
    return pl.pallas_call(
        partial(_seqconv_agg_kernel, tile_n),
        out_shape=jax.ShapeDtypeStruct((Nn, D), F32),
        grid=(Nn // tile_n,),
        in_specs=[full((1, 2 * Ep)), full((1, 2 * Ep)), full((2 * Ep, D))],
        out_specs=pl.BlockSpec((tile_n, D), lambda i: (i, 0)),
        compiler_params=pltpu.CompilerParams(
            dimension_semantics=("parallel",), vmem_limit_bytes=VMEM_LIMIT),
    )(logits, dst_row, xj_all)


def transformer_branch(q_in, kv, key_mask, pos_mask, params, name,
                       num_heads=2, residual=True, masked_mean=True):
    B, Lq, D = q_in.shape
    dh = D // num_heads
    scale = 1.0 / math.sqrt(dh)
    ap = params[f"{name}_attn"]
    ln1_g, ln1_b = params[f"{name}_ln"]
    ln2_g, ln2_b = params[f"{name}_attn_ln"]
    w1, b1, w2, b2 = params[f"{name}_ffn"]

    # Whole batch in one invocation (B is small; all [D,D] weights are resident anyway).
    out = pl.pallas_call(
        partial(_branch_kernel, num_heads, scale, 1e-8, residual, masked_mean),
        out_shape=jax.ShapeDtypeStruct((B, 1, D), F32),
        compiler_params=pltpu.CompilerParams(vmem_limit_bytes=VMEM_LIMIT),
    )(q_in.astype(F32), kv.astype(F32), key_mask, pos_mask,
      ln1_g.reshape(1, D), ln1_b.reshape(1, D),
      ap["wq"], ap["bq"], ap["wk"], ap["bk"], ap["wv"], ap["bv"], ap["wo"], ap["bo"],
      ln2_g.reshape(1, D), ln2_b.reshape(1, D),
      w1, b1.reshape(1, D), w2, b2.reshape(1, D))
    return out.reshape(B, D)


# ----------------------------------------------------------------------------
# Glue: adjacency build, padding (vectorized), parameters
# ----------------------------------------------------------------------------

def build_geo_adjacency(n_poi, Np, edge_index, edge_attr):
    """add_self_loops + exp(-d^2) + gcn_norm, materialised as a dense [Np, Np] operator
    such that (W @ x)[dst] = sum_src norm * dist_vec * x[src].  Returned in bf16 (halves
    the dominant Np^2 HBM stream/capacity; accumulation in the kernel stays f32)."""
    row = jnp.concatenate([edge_index[0], jnp.arange(n_poi, dtype=jnp.int32)])
    col = jnp.concatenate([edge_index[1], jnp.arange(n_poi, dtype=jnp.int32)])
    dist = jnp.concatenate([edge_attr.astype(F32), jnp.zeros((n_poi,), F32)])
    dist_vec = jnp.exp(-dist ** 2)
    deg = jnp.zeros((Np,), F32).at[col].add(1.0)
    dis = jnp.where(deg > 0, lax.rsqrt(jnp.maximum(deg, 1e-12)), 0.0)
    w = dis[row] * dis[col] * dist_vec
    # TODO(synk): dense O(n_poi^2) operator; a CSR / padded-neighbor-list formulation with
    # scalar-prefetch gathers would avoid this footprint for very large POI vocabularies.
    return jnp.zeros((Np, Np), F32).at[col, row].add(w).astype(BF16)


def pad_gather(source, index_rows, lengths, L_pad):
    """Vectorized pad_sequence: one gather + mask (no per-row device scatters)."""
    B = len(index_rows)
    idx = np.zeros((B, L_pad), dtype=np.int32)
    for b, r in enumerate(index_rows):
        r = np.asarray(r, dtype=np.int32)
        idx[b, :r.shape[0]] = r
    mask = (np.arange(L_pad)[None, :] < np.asarray(lengths)[:, None]).astype(np.float32)
    mask_j = jnp.asarray(mask)
    padded = source[jnp.asarray(idx)] * mask_j[:, :, None]
    return padded, mask_j[:, None, :], mask_j[:, :, None]


def init_params(key, n_poi, hid_dim, interval, num_layer):
    D = hid_dim
    keys = iter(jax.random.split(key, 64))

    def nrm(shape, scale=0.1):
        return (scale * jax.random.normal(next(keys), shape)).astype(F32)

    p = {
        "poi_emb": nrm((n_poi, D)),
        "distance_emb": nrm((interval, D)),
        "temporal_emb": nrm((interval, D)),
        "geo_lin_w": [nrm((D, D)) for _ in range(num_layer)],
        "geo_lin_b": [nrm((D,), 0.01) for _ in range(num_layer)],
        "alpha_src": nrm((1, D)),
        "alpha_dst": nrm((1, D)),
        "sde_w1": nrm((2 * D, D)), "sde_b1": nrm((D,), 0.01),
        "sde_w2": nrm((D, D)), "sde_b2": nrm((D,), 0.01),
    }
    for name in ("seq", "geo"):
        p[f"{name}_ln"] = (jnp.ones((D,), F32), jnp.zeros((D,), F32))
        p[f"{name}_attn_ln"] = (jnp.ones((D,), F32), jnp.zeros((D,), F32))
        p[f"{name}_attn"] = dict(
            wq=nrm((D, D)), bq=nrm((1, D), 0.01),
            wk=nrm((D, D)), bk=nrm((1, D), 0.01),
            wv=nrm((D, D)), bv=nrm((1, D), 0.01),
            wo=nrm((D, D)), bo=nrm((1, D), 0.01))
        p[f"{name}_ffn"] = (nrm((D, D)), nrm((D,), 0.01), nrm((D, D)), nrm((D,), 0.01))
    return p


# ----------------------------------------------------------------------------
# Forward pass
# ----------------------------------------------------------------------------

def diffpoi_forward(params, seqs, seq_graph, geo_graph, cfg):
    D = cfg["hid_dim"]
    n_poi = cfg["n_poi"]
    num_layer = cfg["num_layer"]
    B = len(seqs)

    Np = round_up(n_poi, POI_TILE)
    poi_pad = jnp.zeros((Np, D), F32).at[:n_poi].set(params["poi_emb"])

    # -------------------- seqProp --------------------
    node_counts = list(seq_graph["node_counts"])
    seq_embs = seq_conv(params, params["poi_emb"], seq_graph)         # [Nn_pad, D]
    L = round_up(max(node_counts), 8)
    offsets = np.concatenate([[0], np.cumsum(node_counts)[:-1]]).astype(np.int64)
    seq_rows = [np.arange(o, o + c) for o, c in zip(offsets, node_counts)]
    seq_pad, kmask_s, pmask_s = pad_gather(seq_embs, seq_rows, node_counts, L)

    seq_encs = transformer_branch(seq_pad, seq_pad, kmask_s, pmask_s, params, "seq",
                                  num_heads=2, residual=True, masked_mean=True)   # [B, D]

    # -------------------- geoProp --------------------
    w_geo = build_geo_adjacency(n_poi, Np, geo_graph["edge_index"], geo_graph["edge_attr"])
    geo_embs = geo_encode(params, poi_pad, w_geo, num_layer)          # [Np, D], layer-averaged

    geo_lengths = [int(s.shape[0]) for s in seqs]
    Lg = round_up(max(geo_lengths), 8)
    geo_pad, kmask_g, pmask_g = pad_gather(geo_embs, [np.asarray(s) for s in seqs],
                                           geo_lengths, Lg)

    geo_encs = transformer_branch(seq_encs[:, None, :], geo_pad, kmask_g, pmask_g,
                                  params, "geo", num_heads=2, residual=False,
                                  masked_mean=False)                  # [B, D]

    # -------------------- sdeProp (reverse SDE, deterministic drift) --------------------
    beta_min, beta_max = cfg["beta_min"], cfg["beta_max"]
    dt, diffsize = cfg["dt"], cfg["diffsize"]
    n_steps = max(1, int(round(diffsize / dt)))
    betas = tuple(
        (beta_min + (n * dt) * (beta_max - beta_min),
         beta_min + (n * dt + 0.5 * dt) * (beta_max - beta_min))
        for n in range(n_steps))
    sde_w1 = params["sde_w1"]
    sde_encs = pl.pallas_call(
        partial(_sde_kernel, betas, dt),
        out_shape=jax.ShapeDtypeStruct((B, D), F32),
        compiler_params=pltpu.CompilerParams(vmem_limit_bytes=VMEM_LIMIT),
    )(geo_encs, seq_encs, sde_w1[:D], sde_w1[D:],
      params["sde_b1"].reshape(1, D), params["sde_w2"], params["sde_b2"].reshape(1, D))

    # -------------------- prediction logits (model_type == 'u') --------------------
    # One K=2D MXU pass on the concatenated operands, bf16 streamed, f32 accumulation.
    q_cat = jnp.concatenate([seq_encs, sde_encs], axis=1).astype(BF16)      # [B, 2D]
    k_cat = jnp.concatenate([poi_pad, geo_embs], axis=1).astype(BF16)       # [Np, 2D]
    pred = pl.pallas_call(
        _pred_kernel,
        out_shape=jax.ShapeDtypeStruct((B, Np), F32),
        grid=(Np // POI_TILE,),
        in_specs=[
            pl.BlockSpec((B, 2 * D), lambda j: (0, 0)),
            pl.BlockSpec((POI_TILE, 2 * D), lambda j: (j, 0)),
        ],
        out_specs=pl.BlockSpec((B, POI_TILE), lambda j: (0, j)),
        compiler_params=pltpu.CompilerParams(
            dimension_semantics=("parallel",), vmem_limit_bytes=VMEM_LIMIT),
    )(q_cat, k_cat)
    pred_logits = pred[:, :n_poi]

    return pred_logits, geo_encs


# ----------------------------------------------------------------------------
# Example run
# ----------------------------------------------------------------------------

if __name__ == "__main__":
    key = jax.random.PRNGKey(0)
    n_poi, hid_dim, interval, num_layer = 16, 32, 8, 2

    cfg = dict(n_poi=n_poi, hid_dim=hid_dim, num_layer=num_layer,
               beta_min=0.1, beta_max=20.0, dt=0.1, diffsize=0.3)

    k = jax.random.split(key, 12)
    params = init_params(k[0], n_poi, hid_dim, interval, num_layer)

    # geo graph: 24 random directed POI->POI edges with distances
    E_geo = 24
    geo_graph = dict(
        edge_index=jnp.stack([
            jax.random.randint(k[1], (E_geo,), 0, n_poi, dtype=jnp.int32),
            jax.random.randint(k[2], (E_geo,), 0, n_poi, dtype=jnp.int32)]),
        edge_attr=jax.random.uniform(k[3], (E_geo,), dtype=F32) * 2.0)

    # seq graph: 2 sessions with 5 and 7 check-in nodes, chain edges within sessions
    node_counts = [5, 7]
    n_nodes = sum(node_counts)
    src_l, dst_l, off = [], [], 0
    for c in node_counts:
        for i in range(c - 1):
            src_l.append(off + i)
            dst_l.append(off + i + 1)
        off += c
    E_seq = len(src_l)
    seq_graph = dict(
        x=jax.random.randint(k[4], (n_nodes,), 0, n_poi, dtype=jnp.int32),
        edge_index=jnp.array([src_l, dst_l], dtype=jnp.int32),
        edge_time=jax.random.randint(k[5], (E_seq,), 0, interval, dtype=jnp.int32),
        edge_dist=jax.random.randint(k[6], (E_seq,), 0, interval, dtype=jnp.int32),
        node_counts=node_counts)

    # raw visit sequences (used for geo lookup), lengths 6 and 4
    seqs = [jax.random.randint(k[7], (6,), 0, n_poi, dtype=jnp.int32),
            jax.random.randint(k[8], (4,), 0, n_poi, dtype=jnp.int32)]

    pred_logits, geo_encs = diffpoi_forward(params, seqs, seq_graph, geo_graph, cfg)
    jax.block_until_ready((pred_logits, geo_encs))
    assert pred_logits.shape == (2, n_poi) and geo_encs.shape == (2, hid_dim)
    assert bool(jnp.all(jnp.isfinite(pred_logits))) and bool(jnp.all(jnp.isfinite(geo_encs)))
    print("KERNEL_OK")
</pallas_src>

<mosaic_0001>
module attributes {stable_mosaic.version = 11 : i64} {
  func.func @_seqconv_logit_kernel(%arg0: memref<256x32xf32, #tpu.memory_space<vmem>>, %arg1: memref<256x32xf32, #tpu.memory_space<vmem>>, %arg2: memref<256x32xf32, #tpu.memory_space<vmem>>, %arg3: memref<1x32xf32, #tpu.memory_space<vmem>>, %arg4: memref<1x32xf32, #tpu.memory_space<vmem>>, %arg5: memref<1x256xf32, #tpu.memory_space<vmem>>) attributes {dimension_semantics = [], scalar_prefetch = 0 : i64, scratch_operands = 0 : i64, tpu.core_type = #tpu.core_type<tc>} {
    %c0 = arith.constant 0 : index
    %c0_0 = arith.constant 0 : index
    %0 = vector.load %arg0[%c0, %c0_0] : memref<256x32xf32, #tpu.memory_space<vmem>>, vector<256x32xf32>
    %c0_1 = arith.constant 0 : index
    %c0_2 = arith.constant 0 : index
    %1 = vector.load %arg1[%c0_1, %c0_2] : memref<256x32xf32, #tpu.memory_space<vmem>>, vector<256x32xf32>
    %2 = arith.mulf %0, %1 : vector<256x32xf32>
    %c0_3 = arith.constant 0 : index
    %c0_4 = arith.constant 0 : index
    %3 = vector.load %arg2[%c0_3, %c0_4] : memref<256x32xf32, #tpu.memory_space<vmem>>, vector<256x32xf32>
    %4 = arith.addf %2, %3 : vector<256x32xf32>
    %c0_5 = arith.constant 0 : index
    %c0_6 = arith.constant 0 : index
    %5 = vector.load %arg3[%c0_5, %c0_6] : memref<1x32xf32, #tpu.memory_space<vmem>>, vector<1x32xf32>
    %cst = arith.constant dense<0.000000e+00> : vector<1x256xf32>
    %6 = tpu.matmul %5, %4, %cst {dimension_numbers = #tpu.dot_dimension_numbers<[1], [1], [0], [0], [0, 0, 1, 0], [], []>} : vector<1x32xf32>, vector<256x32xf32>, vector<1x256xf32> -> vector<1x256xf32>
    %c0_7 = arith.constant 0 : index
    %c0_8 = arith.constant 0 : index
    %7 = vector.load %arg4[%c0_7, %c0_8] : memref<1x32xf32, #tpu.memory_space<vmem>>, vector<1x32xf32>
    %cst_9 = arith.constant dense<0.000000e+00> : vector<1x256xf32>
    %8 = tpu.matmul %7, %4, %cst_9 {dimension_numbers = #tpu.dot_dimension_numbers<[1], [1], [0], [0], [0, 0, 1, 0], [], []>} : vector<1x32xf32>, vector<256x32xf32>, vector<1x256xf32> -> vector<1x256xf32>
    %9 = tpu.iota {dimensions = array<i32: 1>} : vector<1x256xi32>
    %c128_i32 = arith.constant 128 : i32
    %10 = vector.broadcast %c128_i32 : i32 to vector<1x256xi32>
    %11 = arith.cmpi slt, %9, %10 : vector<1x256xi32>
    %12 = arith.select %11, %6, %8 : vector<1x256xi1>, vector<1x256xf32>
    %c0_10 = arith.constant 0 : index
    %c0_11 = arith.constant 0 : index
    %13 = vector.load %arg5[%c0_10, %c0_11] : memref<1x256xf32, #tpu.memory_space<vmem>>, vector<1x256xf32>
    tpu.vector_store %arg5[%c0_10, %c0_11], %12 {strides = array<i32>} : memref<1x256xf32, #tpu.memory_space<vmem>>, vector<1x256xf32>,
    return
  }
}

</mosaic_0001>

<llo_original>
// kernel: tpu_custom_call.1
$region0: #{tpu_custom_call.1}
  #allocation0 [shape = 'u32[]', space=smem, size = 0x4, offset = 0x4, fixed_abs, tag = 'smem constant byte address 0x4 - core index']
  #allocation1 [shape = 'u32[144,128]{1,0:T(1,128)}', space=vmem, size = 0x12000, scoped, tag = 'internal scratch']
  %s0 = inlined_call_operand.vmem [shape: f32[256,32], index: 0, kind: input, shape index: {}]
  %s1 = inlined_call_operand.vmem [shape: f32[256,32], index: 1, kind: input, shape index: {}]
  %s2 = inlined_call_operand.vmem [shape: f32[256,32], index: 2, kind: input, shape index: {}]
  %s3 = inlined_call_operand.vmem [shape: f32[1,32], index: 3, kind: input, shape index: {}]
  %s4 = inlined_call_operand.vmem [shape: f32[1,32], index: 4, kind: input, shape index: {}]
  %s5 = inlined_call_operand.hbm [shape: f32[1,256], index: 5, kind: output, shape index: {}]
  %s6 = sld [smem:[#allocation0]]
  $region30: #{tpu_custom_call.1} parent=0
    _
  %s8 = ssub.s32 1, %s6
  %s9 = scalar_select 0, %s8, %s6
  $region1: #{tpu_custom_call.1} parent=0
    #allocation2 [shape = 'u8[1024]{0}', space=vmem, size = 0x400, scoped, tag = 'output window, operand 0, single buffered']
    #allocation3 [shape = 's32[1]{0}', space=sflag, size = 0x4, scoped, tag = 'scoped memory for tpu_custom_call.1']
    %10 = vsyncpa [#allocation3], 0
    // Predicated region
    $region2: #{tpu_custom_call.1} parent=1 // pred_check
      _
    $region3: #{tpu_custom_call.1} parent=1 // pred_check_branch
      %12 = sbr.rel (0) target = $region5
    $region4: #{tpu_custom_call.1} parent=1 // pred_region
      _
    $region5: #{tpu_custom_call.1} parent=1 // pred_fallthru
      _
    // Predicated region
    $region6: #{tpu_custom_call.1} parent=1 // pred_check
      _
    $region7: #{tpu_custom_call.1} parent=1 // pred_check_branch
      %14 = sbr.rel (0) target = $region9
    $region8: #{tpu_custom_call.1} parent=1 // pred_region
      _
    $region9: #{tpu_custom_call.1} parent=1 // pred_fallthru
      _
    // Predicated region
    $region10: #{tpu_custom_call.1} parent=1 // pred_check
      _
    $region11: #{tpu_custom_call.1} parent=1 // pred_check_branch
      %16 = sbr.rel (0) target = $region13
    $region12: #{tpu_custom_call.1} parent=1 // pred_region
      _
    $region13: #{tpu_custom_call.1} parent=1 // pred_fallthru
      _
    // Predicated region
    $region14: #{tpu_custom_call.1} parent=1 // pred_check
      _
    $region15: #{tpu_custom_call.1} parent=1 // pred_check_branch
      %18 = sbr.rel (0) target = $region17
    $region16: #{tpu_custom_call.1} parent=1 // pred_region
      _
    $region17: #{tpu_custom_call.1} parent=1 // pred_fallthru
      _
    // Predicated region
    $region18: #{tpu_custom_call.1} parent=1 // pred_check
      _
    $region19: #{tpu_custom_call.1} parent=1 // pred_check_branch
      %20 = sbr.rel (0) target = $region21
    $region20: #{tpu_custom_call.1} parent=1 // pred_region
      _
    $region21: #{tpu_custom_call.1} parent=1 // pred_fallthru
      _
    %v21 = vld [vmem:[%s0] sm:$0xff]
    %v22 = vld [vmem:[%s0 + $0x8] sm:$0xff]
    %v23 = vld [vmem:[%s0 + $0x10] sm:$0xff]
    %v24 = vld [vmem:[%s0 + $0x18] sm:$0xff]
    %v25 = vld [vmem:[%s0 + $0x20] sm:$0xff]
    %v26 = vld [vmem:[%s0 + $0x28] sm:$0xff]
    %v27 = vld [vmem:[%s0 + $0x30] sm:$0xff]
    %v28 = vld [vmem:[%s0 + $0x38] sm:$0xff]
    %v29 = vld [vmem:[%s0 + $0x40] sm:$0xff]
    %v30 = vld [vmem:[%s0 + $0x48] sm:$0xff]
    %v31 = vld [vmem:[%s0 + $0x50] sm:$0xff]
    %v32 = vld [vmem:[%s0 + $0x58] sm:$0xff]
    %v33 = vld [vmem:[%s0 + $0x60] sm:$0xff]
    %v34 = vld [vmem:[%s0 + $0x68] sm:$0xff]
    %v35 = vld [vmem:[%s0 + $0x70] sm:$0xff]
    %v36 = vld [vmem:[%s0 + $0x78] sm:$0xff]
    %v37 = vld [vmem:[%s0 + $0x80] sm:$0xff]
    %v38 = vld [vmem:[%s0 + $0x88] sm:$0xff]
    %v39 = vld [vmem:[%s0 + $0x90] sm:$0xff]
    %v40 = vld [vmem:[%s0 + $0x98] sm:$0xff]
    %v41 = vld [vmem:[%s0 + $0xa0] sm:$0xff]
    %v42 = vld [vmem:[%s0 + $0xa8] sm:$0xff]
    %v43 = vld [vmem:[%s0 + $0xb0] sm:$0xff]
    %v44 = vld [vmem:[%s0 + $0xb8] sm:$0xff]
    %v45 = vld [vmem:[%s0 + $0xc0] sm:$0xff]
    %v46 = vld [vmem:[%s0 + $0xc8] sm:$0xff]
    %v47 = vld [vmem:[%s0 + $0xd0] sm:$0xff]
    %v48 = vld [vmem:[%s0 + $0xd8] sm:$0xff]
    %v49 = vld [vmem:[%s0 + $0xe0] sm:$0xff]
    %v50 = vld [vmem:[%s0 + $0xe8] sm:$0xff]
    %v51 = vld [vmem:[%s0 + $0xf0] sm:$0xff]
    %v52 = vld [vmem:[%s0 + $0xf8] sm:$0xff]
    %v53 = vld [vmem:[%s1] sm:$0xff]
    %v54 = vld [vmem:[%s1 + $0x8] sm:$0xff]
    %v55 = vld [vmem:[%s1 + $0x10] sm:$0xff]
    %v56 = vld [vmem:[%s1 + $0x18] sm:$0xff]
    %v57 = vld [vmem:[%s1 + $0x20] sm:$0xff]
    %v58 = vld [vmem:[%s1 + $0x28] sm:$0xff]
    %v59 = vld [vmem:[%s1 + $0x30] sm:$0xff]
    %v60 = vld [vmem:[%s1 + $0x38] sm:$0xff]
    %v61 = vld [vmem:[%s1 + $0x40] sm:$0xff]
    %v62 = vld [vmem:[%s1 + $0x48] sm:$0xff]
    %v63 = vld [vmem:[%s1 + $0x50] sm:$0xff]
    %v64 = vld [vmem:[%s1 + $0x58] sm:$0xff]
    %v65 = vld [vmem:[%s1 + $0x60] sm:$0xff]
    %v66 = vld [vmem:[%s1 + $0x68] sm:$0xff]
    %v67 = vld [vmem:[%s1 + $0x70] sm:$0xff]
    %v68 = vld [vmem:[%s1 + $0x78] sm:$0xff]
    %v69 = vld [vmem:[%s1 + $0x80] sm:$0xff]
    %v70 = vld [vmem:[%s1 + $0x88] sm:$0xff]
    %v71 = vld [vmem:[%s1 + $0x90] sm:$0xff]
    %v72 = vld [vmem:[%s1 + $0x98] sm:$0xff]
    %v73 = vld [vmem:[%s1 + $0xa0] sm:$0xff]
    %v74 = vld [vmem:[%s1 + $0xa8] sm:$0xff]
    %v75 = vld [vmem:[%s1 + $0xb0] sm:$0xff]
    %v76 = vld [vmem:[%s1 + $0xb8] sm:$0xff]
    %v77 = vld [vmem:[%s1 + $0xc0] sm:$0xff]
    %v78 = vld [vmem:[%s1 + $0xc8] sm:$0xff]
    %v79 = vld [vmem:[%s1 + $0xd0] sm:$0xff]
    %v80 = vld [vmem:[%s1 + $0xd8] sm:$0xff]
    %v81 = vld [vmem:[%s1 + $0xe0] sm:$0xff]
    %v82 = vld [vmem:[%s1 + $0xe8] sm:$0xff]
    %v83 = vld [vmem:[%s1 + $0xf0] sm:$0xff]
    %v84 = vld [vmem:[%s1 + $0xf8] sm:$0xff]
    %v85 = vmul.f32 %v21, %v53
    %v86 = vmul.f32 %v22, %v54
    %v87 = vmul.f32 %v23, %v55
    %v88 = vmul.f32 %v24, %v56
    %v89 = vmul.f32 %v25, %v57
    %v90 = vmul.f32 %v26, %v58
    %v91 = vmul.f32 %v27, %v59
    %v92 = vmul.f32 %v28, %v60
    %v93 = vmul.f32 %v29, %v61
    %v94 = vmul.f32 %v30, %v62
    %v95 = vmul.f32 %v31, %v63
    %v96 = vmul.f32 %v32, %v64
    %v97 = vmul.f32 %v33, %v65
    %v98 = vmul.f32 %v34, %v66
    %v99 = vmul.f32 %v35, %v67
    %v100 = vmul.f32 %v36, %v68
    %v101 = vmul.f32 %v37, %v69
    %v102 = vmul.f32 %v38, %v70
    %v103 = vmul.f32 %v39, %v71
    %v104 = vmul.f32 %v40, %v72
    %v105 = vmul.f32 %v41, %v73
    %v106 = vmul.f32 %v42, %v74
    %v107 = vmul.f32 %v43, %v75
    %v108 = vmul.f32 %v44, %v76
    %v109 = vmul.f32 %v45, %v77
    %v110 = vmul.f32 %v46, %v78
    %v111 = vmul.f32 %v47, %v79
    %v112 = vmul.f32 %v48, %v80
    %v113 = vmul.f32 %v49, %v81
    %v114 = vmul.f32 %v50, %v82
    %v115 = vmul.f32 %v51, %v83
    %v116 = vmul.f32 %v52, %v84
    %v117 = vld [vmem:[%s2] sm:$0xff]
    %v118 = vld [vmem:[%s2 + $0x8] sm:$0xff]
    %v119 = vld [vmem:[%s2 + $0x10] sm:$0xff]
    %v120 = vld [vmem:[%s2 + $0x18] sm:$0xff]
    %v121 = vld [vmem:[%s2 + $0x20] sm:$0xff]
    %v122 = vld [vmem:[%s2 + $0x28] sm:$0xff]
    %v123 = vld [vmem:[%s2 + $0x30] sm:$0xff]
    %v124 = vld [vmem:[%s2 + $0x38] sm:$0xff]
    %v125 = vld [vmem:[%s2 + $0x40] sm:$0xff]
    %v126 = vld [vmem:[%s2 + $0x48] sm:$0xff]
    %v127 = vld [vmem:[%s2 + $0x50] sm:$0xff]
    %v128 = vld [vmem:[%s2 + $0x58] sm:$0xff]
    %v129 = vld [vmem:[%s2 + $0x60] sm:$0xff]
    %v130 = vld [vmem:[%s2 + $0x68] sm:$0xff]
    %v131 = vld [vmem:[%s2 + $0x70] sm:$0xff]
    %v132 = vld [vmem:[%s2 + $0x78] sm:$0xff]
    %v133 = vld [vmem:[%s2 + $0x80] sm:$0xff]
    %v134 = vld [vmem:[%s2 + $0x88] sm:$0xff]
    %v135 = vld [vmem:[%s2 + $0x90] sm:$0xff]
    %v136 = vld [vmem:[%s2 + $0x98] sm:$0xff]
    %v137 = vld [vmem:[%s2 + $0xa0] sm:$0xff]
    %v138 = vld [vmem:[%s2 + $0xa8] sm:$0xff]
    %v139 = vld [vmem:[%s2 + $0xb0] sm:$0xff]
    %v140 = vld [vmem:[%s2 + $0xb8] sm:$0xff]
    %v141 = vld [vmem:[%s2 + $0xc0] sm:$0xff]
    %v142 = vld [vmem:[%s2 + $0xc8] sm:$0xff]
    %v143 = vld [vmem:[%s2 + $0xd0] sm:$0xff]
    %v144 = vld [vmem:[%s2 + $0xd8] sm:$0xff]
    %v145 = vld [vmem:[%s2 + $0xe0] sm:$0xff]
    %v146 = vld [vmem:[%s2 + $0xe8] sm:$0xff]
    %v147 = vld [vmem:[%s2 + $0xf0] sm:$0xff]
    %v148 = vld [vmem:[%s2 + $0xf8] sm:$0xff]
    %v149 = vadd.f32 %v85, %v117
    %v150 = vadd.f32 %v86, %v118
    %v151 = vadd.f32 %v87, %v119
    %v152 = vadd.f32 %v88, %v120
    %v153 = vadd.f32 %v89, %v121
    %v154 = vadd.f32 %v90, %v122
    %v155 = vadd.f32 %v91, %v123
    %v156 = vadd.f32 %v92, %v124
    %v157 = vadd.f32 %v93, %v125
    %v158 = vadd.f32 %v94, %v126
    %v159 = vadd.f32 %v95, %v127
    %v160 = vadd.f32 %v96, %v128
    %v161 = vadd.f32 %v97, %v129
    %v162 = vadd.f32 %v98, %v130
    %v163 = vadd.f32 %v99, %v131
    %v164 = vadd.f32 %v100, %v132
    %v165 = vadd.f32 %v101, %v133
    %v166 = vadd.f32 %v102, %v134
    %v167 = vadd.f32 %v103, %v135
    %v168 = vadd.f32 %v104, %v136
    %v169 = vadd.f32 %v105, %v137
    %v170 = vadd.f32 %v106, %v138
    %v171 = vadd.f32 %v107, %v139
    %v172 = vadd.f32 %v108, %v140
    %v173 = vadd.f32 %v109, %v141
    %v174 = vadd.f32 %v110, %v142
    %v175 = vadd.f32 %v111, %v143
    %v176 = vadd.f32 %v112, %v144
    %v177 = vadd.f32 %v113, %v145
    %v178 = vadd.f32 %v114, %v146
    %v179 = vadd.f32 %v115, %v147
    %v180 = vadd.f32 %v116, %v148
    %v181 = vld [vmem:[%s3] sm:$0x1]
    %vm182 = vcmask 261120
    %v184 = vsel %vm182, %v181, 0
    %v187 = vsel %vm182, %v149, 0
    %v190 = vsel %vm182, %v150, 0
    %v193 = vsel %vm182, %v151, 0
    %v196 = vsel %vm182, %v152, 0
    %v199 = vsel %vm182, %v153, 0
    %v202 = vsel %vm182, %v154, 0
    %v205 = vsel %vm182, %v155, 0
    %v208 = vsel %vm182, %v156, 0
    %v211 = vsel %vm182, %v157, 0
    %v214 = vsel %vm182, %v158, 0
    %v217 = vsel %vm182, %v159, 0
    %v220 = vsel %vm182, %v160, 0
    %v223 = vsel %vm182, %v161, 0
    %v226 = vsel %vm182, %v162, 0
    %v229 = vsel %vm182, %v163, 0
    %v232 = vsel %vm182, %v164, 0
    %v235 = vsel %vm182, %v165, 0
    %v238 = vsel %vm182, %v166, 0
    %v241 = vsel %vm182, %v167, 0
    %v244 = vsel %vm182, %v168, 0
    %v247 = vsel %vm182, %v169, 0
    %v250 = vsel %vm182, %v170, 0
    %v253 = vsel %vm182, %v171, 0
    %v256 = vsel %vm182, %v172, 0
    %v259 = vsel %vm182, %v173, 0
    %v262 = vsel %vm182, %v174, 0
    %v265 = vsel %vm182, %v175, 0
    %v268 = vsel %vm182, %v176, 0
    %v271 = vsel %vm182, %v177, 0
    %v274 = vsel %vm182, %v178, 0
    %v277 = vsel %vm182, %v179, 0
    %v280 = vsel %vm182, %v180, 0
    %282 = vmatprep.subr.mxu0 0.0
    %283 = vmatpush1.xpose.msra.mxu0 %v187
    %284 = vmatprep.subr.mxu0 0.0
    %285 = vmatpush1.xpose.msra.mxu0 %v190
    %286 = vmatprep.subr.mxu0 0.0
    %287 = vmatpush1.xpose.msra.mxu0 %v193
    %288 = vmatprep.subr.mxu0 0.0
    %289 = vmatpush1.xpose.msra.mxu0 %v196
    %290 = vmatprep.subr.mxu0 0.0
    %291 = vmatpush1.xpose.msra.mxu0 %v199
    %292 = vmatprep.subr.mxu0 0.0
    %293 = vmatpush1.xpose.msra.mxu0 %v202
    %294 = vmatprep.subr.mxu0 0.0
    %295 = vmatpush1.xpose.msra.mxu0 %v205
    %296 = vmatprep.subr.mxu0 0.0
    %297 = vmatpush1.xpose.msra.mxu0 %v208
    %298 = vmatprep.subr.mxu0 0.0
    %299 = vmatpush1.xpose.msra.mxu0 %v211
    %300 = vmatprep.subr.mxu0 0.0
    %301 = vmatpush1.xpose.msra.mxu0 %v214
    %302 = vmatprep.subr.mxu0 0.0
    %303 = vmatpush1.xpose.msra.mxu0 %v217
    %304 = vmatprep.subr.mxu0 0.0
    %305 = vmatpush1.xpose.msra.mxu0 %v220
    %306 = vmatprep.subr.mxu0 0.0
    %307 = vmatpush1.xpose.msra.mxu0 %v223
    %308 = vmatprep.subr.mxu0 0.0
    %309 = vmatpush1.xpose.msra.mxu0 %v226
    %310 = vmatprep.subr.mxu0 0.0
    %311 = vmatpush1.xpose.msra.mxu0 %v229
    %312 = vmatprep.subr.mxu0 0.0
    %313 = vmatpush1.xpose.msra.mxu0 %v232
    %314 = vmatprep.subr.mxu0 0.0
    %315 = vmatpush1.xpose.msra.mxu0 %v235
    %316 = vmatprep.subr.mxu0 0.0
    %317 = vmatpush1.xpose.msra.mxu0 %v238
    %318 = vmatprep.subr.mxu0 0.0
    %319 = vmatpush1.xpose.msra.mxu0 %v241
    %320 = vmatprep.subr.mxu0 0.0
    %321 = vmatpush1.xpose.msra.mxu0 %v244
    %322 = vmatprep.subr.mxu0 0.0
    %323 = vmatpush1.xpose.msra.mxu0 %v247
    %324 = vmatprep.subr.mxu0 0.0
    %325 = vmatpush1.xpose.msra.mxu0 %v250
    %326 = vmatprep.subr.mxu0 0.0
    %327 = vmatpush1.xpose.msra.mxu0 %v253
    %328 = vmatprep.subr.mxu0 0.0
    %329 = vmatpush1.xpose.msra.mxu0 %v256
    %330 = vmatprep.subr.mxu0 0.0
    %331 = vmatpush1.xpose.msra.mxu0 %v259
    %332 = vmatprep.subr.mxu0 0.0
    %333 = vmatpush1.xpose.msra.mxu0 %v262
    %334 = vmatprep.subr.mxu0 0.0
    %335 = vmatpush1.xpose.msra.mxu0 %v265
    %336 = vmatprep.subr.mxu0 0.0
    %337 = vmatpush1.xpose.msra.mxu0 %v268
    %338 = vmatprep.subr.mxu0 0.0
    %339 = vmatpush1.xpose.msra.mxu0 %v271
    %340 = vmatprep.subr.mxu0 0.0
    %341 = vmatpush1.xpose.msra.mxu0 %v274
    %342 = vmatprep.subr.mxu0 0.0
    %343 = vmatpush1.xpose.msra.mxu0 %v277
    %344 = vmatprep.subr.mxu0 0.0
    %345 = vmatpush1.xpose.msra.mxu0 %v280
    %346 = vmatprep.mubr.f32.mxu0 0.0
    %347 = vmatmul.mubr.f32.gmra.mrb[0].mxu0 %v184
    %v348 = vpop.f32.mrb[0].mxu0
    %v349 = vadd.f32 0.0, %v348
    %v350 = vpop.f32.mrb[0].mxu0
    %v351 = vadd.f32 0.0, %v350
    %352 = vdwg.mxu0
    %v353 = vld [vmem:[%s4] sm:$0x1]
    %v355 = vsel %vm182, %v353, 0
    %357 = vmatprep.subr.mxu0 0.0
    %358 = vmatpush1.xpose.msra.mxu0 %v187
    %359 = vmatprep.subr.mxu0 0.0
    %360 = vmatpush1.xpose.msra.mxu0 %v190
    %361 = vmatprep.subr.mxu0 0.0
    %362 = vmatpush1.xpose.msra.mxu0 %v193
    %363 = vmatprep.subr.mxu0 0.0
    %364 = vmatpush1.xpose.msra.mxu0 %v196
    %365 = vmatprep.subr.mxu0 0.0
    %366 = vmatpush1.xpose.msra.mxu0 %v199
    %367 = vmatprep.subr.mxu0 0.0
    %368 = vmatpush1.xpose.msra.mxu0 %v202
    %369 = vmatprep.subr.mxu0 0.0
    %370 = vmatpush1.xpose.msra.mxu0 %v205
    %371 = vmatprep.subr.mxu0 0.0
    %372 = vmatpush1.xpose.msra.mxu0 %v208
    %373 = vmatprep.subr.mxu0 0.0
    %374 = vmatpush1.xpose.msra.mxu0 %v211
    %375 = vmatprep.subr.mxu0 0.0
    %376 = vmatpush1.xpose.msra.mxu0 %v214
    %377 = vmatprep.subr.mxu0 0.0
    %378 = vmatpush1.xpose.msra.mxu0 %v217
    %379 = vmatprep.subr.mxu0 0.0
    %380 = vmatpush1.xpose.msra.mxu0 %v220
    %381 = vmatprep.subr.mxu0 0.0
    %382 = vmatpush1.xpose.msra.mxu0 %v223
    %383 = vmatprep.subr.mxu0 0.0
    %384 = vmatpush1.xpose.msra.mxu0 %v226
    %385 = vmatprep.subr.mxu0 0.0
    %386 = vmatpush1.xpose.msra.mxu0 %v229
    %387 = vmatprep.subr.mxu0 0.0
    %388 = vmatpush1.xpose.msra.mxu0 %v232
    %389 = vmatprep.subr.mxu0 0.0
    %390 = vmatpush1.xpose.msra.mxu0 %v235
    %391 = vmatprep.subr.mxu0 0.0
    %392 = vmatpush1.xpose.msra.mxu0 %v238
    %393 = vmatprep.subr.mxu0 0.0
    %394 = vmatpush1.xpose.msra.mxu0 %v241
    %395 = vmatprep.subr.mxu0 0.0
    %396 = vmatpush1.xpose.msra.mxu0 %v244
    %397 = vmatprep.subr.mxu0 0.0
    %398 = vmatpush1.xpose.msra.mxu0 %v247
    %399 = vmatprep.subr.mxu0 0.0
    %400 = vmatpush1.xpose.msra.mxu0 %v250
    %401 = vmatprep.subr.mxu0 0.0
    %402 = vmatpush1.xpose.msra.mxu0 %v253
    %403 = vmatprep.subr.mxu0 0.0
    %404 = vmatpush1.xpose.msra.mxu0 %v256
    %405 = vmatprep.subr.mxu0 0.0
    %406 = vmatpush1.xpose.msra.mxu0 %v259
    %407 = vmatprep.subr.mxu0 0.0
    %408 = vmatpush1.xpose.msra.mxu0 %v262
    %409 = vmatprep.subr.mxu0 0.0
    %410 = vmatpush1.xpose.msra.mxu0 %v265
    %411 = vmatprep.subr.mxu0 0.0
    %412 = vmatpush1.xpose.msra.mxu0 %v268
    %413 = vmatprep.subr.mxu0 0.0
    %414 = vmatpush1.xpose.msra.mxu0 %v271
    %415 = vmatprep.subr.mxu0 0.0
    %416 = vmatpush1.xpose.msra.mxu0 %v274
    %417 = vmatprep.subr.mxu0 0.0
    %418 = vmatpush1.xpose.msra.mxu0 %v277
    %419 = vmatprep.subr.mxu0 0.0
    %420 = vmatpush1.xpose.msra.mxu0 %v280
    %421 = vmatprep.mubr.f32.mxu0 0.0
    %422 = vmatmul.mubr.f32.gmra.mrb[0].mxu0 %v355
    %v423 = vpop.f32.mrb[0].mxu0
    %v424 = vadd.f32 0.0, %v423
    %v425 = vpop.f32.mrb[0].mxu0
    %v426 = vadd.f32 0.0, %v425
    %427 = vdwg.mxu0
    %v428 = vlaneseq
    %v429 = vand.u32 %v428, 127
    %v430 = vadd.s32 %v429, 128
    %vm431 = vcmp.lt.s32.totalorder %v429, 128
    %vm432 = vcmp.lt.s32.totalorder %v430, 128
    %v433 = vsel %vm431, %v349, %v424
    %v434 = vsel %vm432, %v351, %v426
    %v437 = vcombine.low %v433, %v434
    %v439 = vunpack.c.l.s4 1966171168
    %v440 = vunpack.c.0.s8 %v439
    %v441 = vlaneseq
    %v442 = vshrl.u32 %v441, 7
    %v443 = vsub.s32 %v440, %v442
    %v444 = vrot.slane %v437, %v443
    %v446 = vunpack.c.l.s4 1966171168
    %v447 = vunpack.c.0.s8 %v446
    %v448 = vlaneseq
    %v449 = vshrl.u32 %v448, 7
    %v450 = vsub.s32 %v447, %v449
    %v451 = vrot.slane %v444, %v450
    %v453 = vlaneseq
    %vm454 = vcmp.ge.s32.totalorder %v453, 0
    %vm455 = vcmp.lt.s32.totalorder %v453, 256
    %vm456 = vmand %vm454, %vm455
    %457 = vst.msk [vmem:[#allocation2] sm:$0x3] %vm456, %v451
    // Predicated region
    $region22: #{tpu_custom_call.1} parent=1 // pred_check
      _
    $region23: #{tpu_custom_call.1} parent=1 // pred_check_branch
      %459 = sbr.rel (0) target = $region25
    $region24: #{tpu_custom_call.1} parent=1 // pred_region
      %s461 = ssub.s32 32, 32
      %462 = vsyncadd [#allocation3], %s461
      %s464 = sshll.u32 [#allocation2], 4
      %s465 = int_to_ptr.vmem [resolvable:$true] %s464
      %467 = dma.vmem_to_hbm [thread:$0]  %s465, 32, %s5, [#allocation3]
    $region25: #{tpu_custom_call.1} parent=1 // pred_fallthru
      _
    // Predicated region
    $region26: #{tpu_custom_call.1} parent=1 // pred_check
      _
    $region27: #{tpu_custom_call.1} parent=1 // pred_check_branch
      %469 = sbr.rel (0) target = $region29
    $region28: #{tpu_custom_call.1} parent=1 // pred_region
      %470 = dma.done [#allocation3], 32
    $region29: #{tpu_custom_call.1} parent=1 // pred_fallthru
      _
    %471 = vsyncpa [#allocation3], 1

</llo_original>
